<compile_context>
chip_gen: v6e
topology: v6e:2x2x1
jax: 0.10.0
libtpu: 0.0.40
codegen_flags: <defaults>
</compile_context>

<pallas_src>
import functools

import jax
import jax.numpy as jnp
from jax.experimental import pallas as pl
from jax.experimental.pallas import tpu as pltpu


# ----------------------------- kernel helpers ------------------------------


def _softplus(x):
    # numerically stable: max(x, 0) + log1p(exp(-|x|))
    return jnp.maximum(x, 0.0) + jnp.log1p(jnp.exp(-jnp.abs(x)))


def _mish(x):
    return x * jnp.tanh(_softplus(x))


def _linear(x, w_ref, b_ref):
    w = w_ref[...]
    # bf16 x bf16 matmul with f32 accumulation on the MXU.
    return jnp.dot(x.astype(w.dtype), w, preferred_element_type=jnp.float32) + b_ref[...]


# --------------------------------- kernel ----------------------------------


def dbranch_actor_kernel(
    state_ref,
    # feature extractor (Mish MLP: state_dim -> 64 -> 64 -> A)
    fw1, fb1, fw2, fb2, fw3, fb3,
    # fused probs/alloc branches
    w1c, b1c,      # [A, 2H], [1, 2H]   (N-concat of layer-1 weights)
    w2bd, b2c,     # [2H, 2H], [1, 2H]  (block-diag of layer-2 weights)
    w3bd, b3c,     # [2H, 2A], [1, 2A]  (block-diag of head weights)
    # single fused output: [TB, 3A] = [probs | allocs | action]
    out_ref,
    *, action_dim, hidden, blockdiag_hidden,
):
    a_dim = action_dim
    x = state_ref[...].astype(jnp.float32)

    # ---- feature extractor (Mish) ----
    h = _mish(_linear(x, fw1, fb1))
    h = _mish(_linear(h, fw2, fb2))
    feat = _linear(h, fw3, fb3)

    # ---- both branches, layer 1 fused along N ----
    h1 = jnp.maximum(_linear(feat, w1c, b1c), 0.0)                     # [TB, 2H]

    if blockdiag_hidden:
        # v6e/v7x: 256-wide MXU -> one pass per fused layer.
        h2 = jnp.maximum(_linear(h1, w2bd, b2c), 0.0)                  # [TB, 2H]
        logits = _linear(h2, w3bd, b3c)                                # [TB, 2A]
        probs_logit = logits[:, :a_dim]
        alloc_logit = logits[:, a_dim:]
    else:
        # <=v5 (128-wide MXU): keep the two branch hidden layers as separate 128x128 matmuls.
        w2 = w2bd[...]
        b2 = b2c[...]
        w3 = w3bd[...]
        b3 = b3c[...]
        h1b = h1.astype(w2.dtype)
        p2 = jnp.maximum(
            jnp.dot(h1b[:, :hidden], w2[:hidden, :hidden],
                    preferred_element_type=jnp.float32) + b2[:, :hidden], 0.0)
        a2 = jnp.maximum(
            jnp.dot(h1b[:, hidden:], w2[hidden:, hidden:],
                    preferred_element_type=jnp.float32) + b2[:, hidden:], 0.0)
        probs_logit = jnp.dot(p2.astype(w3.dtype), w3[:hidden, :a_dim],
                              preferred_element_type=jnp.float32) + b3[:, :a_dim]
        alloc_logit = jnp.dot(a2.astype(w3.dtype), w3[hidden:, a_dim:],
                              preferred_element_type=jnp.float32) + b3[:, a_dim:]

    # ---- probs branch head ----
    probs = jax.nn.sigmoid(probs_logit)
    binary_selection = jnp.round(probs)   # forward value of the straight-through estimator

    # ---- alloc branch head (stable softmax, EUP reciprocal) ----
    z = alloc_logit - jnp.max(alloc_logit, axis=-1, keepdims=True)
    e = jnp.exp(z)
    allocs = e * pl.reciprocal(jnp.sum(e, axis=-1, keepdims=True), approx=True)

    # ---- combine ----
    result = binary_selection * allocs
    action = result * pl.reciprocal(
        jnp.sum(result, axis=-1, keepdims=True) + 1e-8, approx=True)

    out_ref[...] = jnp.concatenate([probs, allocs, action], axis=-1).astype(out_ref.dtype)


# -------------------------------- wrapper -----------------------------------


def _round_up(x, m):
    return (x + m - 1) // m * m


def _block_diag(a, b):
    top = jnp.concatenate([a, jnp.zeros((a.shape[0], b.shape[1]), a.dtype)], axis=1)
    bot = jnp.concatenate([jnp.zeros((b.shape[0], a.shape[1]), b.dtype), b], axis=1)
    return jnp.concatenate([top, bot], axis=0)


def _default_blockdiag_hidden():
    """256x256 block-diag fusion only pays on 256-wide MXUs (v6e / v7x)."""
    try:
        kind = jax.devices()[0].device_kind.lower()
    except Exception:
        return True
    return not any(tag in kind for tag in ("v2", "v3", "v4", "v5"))


def _pack_params(params, weight_dtype):
    (fw1, fb1, fw2, fb2, fw3, fb3,
     pw1, pb1, pw2, pb2, pw3, pb3,
     aw1, ab1, aw2, ab2, aw3, ab3) = params
    wd, f32 = weight_dtype, jnp.float32

    w1c = jnp.concatenate([pw1, aw1], axis=1).astype(wd)          # [A, 2H]
    b1c = jnp.concatenate([pb1, ab1], axis=1).astype(f32)         # [1, 2H]
    w2bd = _block_diag(pw2, aw2).astype(wd)                       # [2H, 2H]
    b2c = jnp.concatenate([pb2, ab2], axis=1).astype(f32)         # [1, 2H]
    w3bd = _block_diag(pw3, aw3).astype(wd)                       # [2H, 2A]
    b3c = jnp.concatenate([pb3, ab3], axis=1).astype(f32)         # [1, 2A]

    packed = (fw1.astype(wd), fb1.astype(f32),
              fw2.astype(wd), fb2.astype(f32),
              fw3.astype(wd), fb3.astype(f32),
              w1c, b1c, w2bd, b2c, w3bd, b3c)
    return packed, pw3.shape[1], pw2.shape[0]   # packed, action_dim, hidden


def dbranch_actor(state, params, *, batch_tile=256, blockdiag_hidden=None,
                  weight_dtype=jnp.bfloat16):
    """state: [B, state_dim] f32; params: flat tuple of 18 (W, b) arrays, W as [in, out]."""
    if blockdiag_hidden is None:
        blockdiag_hidden = _default_blockdiag_hidden()

    packed, action_dim, hidden = _pack_params(params, weight_dtype)
    B, state_dim = state.shape

    # batch tiling: tile rows so weights stay VMEM-resident and DMA overlaps compute.
    tb = max(8, min(batch_tile, _round_up(B, 8)))
    b_pad = _round_up(B, tb)
    if b_pad != B:
        state = jnp.pad(state, ((0, b_pad - B), (0, 0)))
    grid = (b_pad // tb,)

    kern = functools.partial(
        dbranch_actor_kernel,
        action_dim=action_dim, hidden=hidden, blockdiag_hidden=blockdiag_hidden)

    state_spec = pl.BlockSpec((tb, state_dim), lambda i: (i, 0))
    weight_specs = [pl.BlockSpec(p.shape, lambda i: (0, 0)) for p in packed]
    out_spec = pl.BlockSpec((tb, 3 * action_dim), lambda i: (i, 0))

    out = pl.pallas_call(
        kern,
        out_shape=jax.ShapeDtypeStruct((b_pad, 3 * action_dim), jnp.float32),
        grid=grid,
        in_specs=[state_spec] + weight_specs,
        out_specs=out_spec,
        compiler_params=pltpu.CompilerParams(dimension_semantics=("parallel",)),
    )(state, *packed)

    probs = out[:B, :action_dim]
    allocs = out[:B, action_dim:2 * action_dim]
    action = out[:B, 2 * action_dim:]
    return probs, allocs, action


# ----------------------------- reference & init ------------------------------


def _reference(state, params):
    (fw1, fb1, fw2, fb2, fw3, fb3,
     pw1, pb1, pw2, pb2, pw3, pb3,
     aw1, ab1, aw2, ab2, aw3, ab3) = params

    def mish(x):
        return x * jnp.tanh(jax.nn.softplus(x))

    def lin(x, w, b):
        return x @ w + b

    h = mish(lin(state, fw1, fb1))
    h = mish(lin(h, fw2, fb2))
    feat = lin(h, fw3, fb3)

    p = jnp.maximum(lin(feat, pw1, pb1), 0.0)
    p = jnp.maximum(lin(p, pw2, pb2), 0.0)
    probs = jax.nn.sigmoid(lin(p, pw3, pb3))
    binary = jnp.round(probs)

    a = jnp.maximum(lin(feat, aw1, ab1), 0.0)
    a = jnp.maximum(lin(a, aw2, ab2), 0.0)
    allocs = jax.nn.softmax(lin(a, aw3, ab3), axis=-1)

    result = binary * allocs
    action = result / (jnp.sum(result, axis=-1, keepdims=True) + 1e-8)
    return probs, allocs, action


def _init_mlp(key, dims):
    """Deterministic small-scale init; weights [in,out], biases [1,out]."""
    params = []
    for i in range(len(dims) - 1):
        key, kw, kb = jax.random.split(key, 3)
        fan_in = dims[i]
        w = jax.random.normal(kw, (dims[i], dims[i + 1]), jnp.float32) / jnp.sqrt(fan_in)
        b = 0.01 * jax.random.normal(kb, (1, dims[i + 1]), jnp.float32)
        params += [w, b]
    return key, params


if __name__ == "__main__":
    batch = 8
    state_dim = 16
    action_dim = 8

    key = jax.random.PRNGKey(0)
    key, feat_params = _init_mlp(key, (state_dim, 64, 64, action_dim))
    key, probs_params = _init_mlp(key, (action_dim, 128, 128, action_dim))
    key, alloc_params = _init_mlp(key, (action_dim, 128, 128, action_dim))
    params = tuple(feat_params + probs_params + alloc_params)

    key, ks = jax.random.split(key)
    state = jax.random.normal(ks, (batch, state_dim), jnp.float32)

    probs, allocs, action = jax.jit(dbranch_actor)(state, params)
    jax.block_until_ready((probs, allocs, action))

    # shape sanity
    assert probs.shape == (batch, action_dim)
    assert allocs.shape == (batch, action_dim)
    assert action.shape == (batch, action_dim)
    assert bool(jnp.all(jnp.isfinite(probs)))
    assert bool(jnp.all(jnp.isfinite(allocs)))
    assert bool(jnp.all(jnp.isfinite(action)))

    # allocs is a softmax: rows sum to ~1 (approx reciprocal + bf16 weights -> loose tol)
    assert bool(jnp.allclose(jnp.sum(allocs, axis=-1), 1.0, atol=2e-2))

    # numeric check of the two smooth heads against a pure-f32 JAX reference
    ref_probs, ref_allocs, _ = _reference(state, params)
    assert bool(jnp.allclose(probs, ref_probs, atol=5e-2, rtol=5e-2))
    assert bool(jnp.allclose(allocs, ref_allocs, atol=5e-2, rtol=5e-2))

    # action consistency with the kernel's own probs/allocs (round() can flip near 0.5,
    # so compare against the combine step recomputed from kernel outputs)
    result = jnp.round(probs) * allocs
    action_chk = result / (jnp.sum(result, axis=-1, keepdims=True) + 1e-8)
    assert bool(jnp.allclose(action, action_chk, atol=2e-2))

    print("KERNEL_OK")
</pallas_src>

<mosaic_0001>
module attributes {stable_mosaic.version = 11 : i64} {
  func.func @dbranch_actor_kernel(%arg0: i32, %arg1: memref<8x16xf32, #tpu.memory_space<vmem>>, %arg2: memref<16x64xbf16, #tpu.memory_space<vmem>>, %arg3: memref<1x64xf32, #tpu.memory_space<vmem>>, %arg4: memref<64x64xbf16, #tpu.memory_space<vmem>>, %arg5: memref<1x64xf32, #tpu.memory_space<vmem>>, %arg6: memref<64x8xbf16, #tpu.memory_space<vmem>>, %arg7: memref<1x8xf32, #tpu.memory_space<vmem>>, %arg8: memref<8x256xbf16, #tpu.memory_space<vmem>>, %arg9: memref<1x256xf32, #tpu.memory_space<vmem>>, %arg10: memref<256x256xbf16, #tpu.memory_space<vmem>>, %arg11: memref<1x256xf32, #tpu.memory_space<vmem>>, %arg12: memref<256x16xbf16, #tpu.memory_space<vmem>>, %arg13: memref<1x16xf32, #tpu.memory_space<vmem>>, %arg14: memref<8x24xf32, #tpu.memory_space<vmem>>) attributes {dimension_semantics = [#tpu.dimension_semantics<parallel>], iteration_bounds = array<i64: 1>, scalar_prefetch = 0 : i64, scratch_operands = 0 : i64, tpu.core_type = #tpu.core_type<tc>, window_params = [{transform_indices = @transform_0, window_bounds = array<i64: 8, 16>}, {pipeline_mode = #tpu.pipeline_mode<synchronous>, transform_indices = @transform_1, window_bounds = array<i64: 16, 64>}, {pipeline_mode = #tpu.pipeline_mode<synchronous>, transform_indices = @transform_2, window_bounds = array<i64: 1, 64>}, {pipeline_mode = #tpu.pipeline_mode<synchronous>, transform_indices = @transform_3, window_bounds = array<i64: 64, 64>}, {pipeline_mode = #tpu.pipeline_mode<synchronous>, transform_indices = @transform_4, window_bounds = array<i64: 1, 64>}, {pipeline_mode = #tpu.pipeline_mode<synchronous>, transform_indices = @transform_5, window_bounds = array<i64: 64, 8>}, {pipeline_mode = #tpu.pipeline_mode<synchronous>, transform_indices = @transform_6, window_bounds = array<i64: 1, 8>}, {pipeline_mode = #tpu.pipeline_mode<synchronous>, transform_indices = @transform_7, window_bounds = array<i64: 8, 256>}, {pipeline_mode = #tpu.pipeline_mode<synchronous>, transform_indices = @transform_8, window_bounds = array<i64: 1, 256>}, {pipeline_mode = #tpu.pipeline_mode<synchronous>, transform_indices = @transform_9, window_bounds = array<i64: 256, 256>}, {pipeline_mode = #tpu.pipeline_mode<synchronous>, transform_indices = @transform_10, window_bounds = array<i64: 1, 256>}, {pipeline_mode = #tpu.pipeline_mode<synchronous>, transform_indices = @transform_11, window_bounds = array<i64: 256, 16>}, {pipeline_mode = #tpu.pipeline_mode<synchronous>, transform_indices = @transform_12, window_bounds = array<i64: 1, 16>}, {transform_indices = @transform_13, window_bounds = array<i64: 8, 24>}]} {
    %c0 = arith.constant 0 : index
    %c0_0 = arith.constant 0 : index
    %0 = vector.load %arg1[%c0, %c0_0] : memref<8x16xf32, #tpu.memory_space<vmem>>, vector<8x16xf32>
    %c0_1 = arith.constant 0 : index
    %c0_2 = arith.constant 0 : index
    %1 = vector.load %arg2[%c0_1, %c0_2] : memref<16x64xbf16, #tpu.memory_space<vmem>>, vector<16x64xbf16>
    %2 = arith.truncf %0 : vector<8x16xf32> to vector<8x16xbf16>
    %cst = arith.constant dense<0.000000e+00> : vector<8x64xf32>
    %3 = tpu.matmul %2, %1, %cst {dimension_numbers = #tpu.dot_dimension_numbers<[1], [0], [0], [1], [0, 0, 1, 1], [], []>} : vector<8x16xbf16>, vector<16x64xbf16>, vector<8x64xf32> -> vector<8x64xf32>
    %c0_3 = arith.constant 0 : index
    %c0_4 = arith.constant 0 : index
    %4 = vector.load %arg3[%c0_3, %c0_4] : memref<1x64xf32, #tpu.memory_space<vmem>>, vector<1x64xf32>
    %5 = vector.broadcast %4 : vector<1x64xf32> to vector<8x64xf32>
    %6 = arith.addf %3, %5 : vector<8x64xf32>
    %cst_5 = arith.constant 0.000000e+00 : f32
    %7 = vector.broadcast %cst_5 : f32 to vector<8x64xf32>
    %8 = arith.maximumf %6, %7 : vector<8x64xf32>
    %9 = math.absf %6 : vector<8x64xf32>
    %cst_6 = arith.constant 0.000000e+00 : f32
    %10 = vector.broadcast %cst_6 : f32 to vector<8x64xf32>
    %11 = arith.subf %10, %9 : vector<8x64xf32>
    %12 = math.exp %11 : vector<8x64xf32>
    %13 = math.log1p %12 : vector<8x64xf32>
    %14 = arith.addf %8, %13 : vector<8x64xf32>
    %15 = math.tanh %14 : vector<8x64xf32>
    %16 = arith.mulf %6, %15 : vector<8x64xf32>
    %c0_7 = arith.constant 0 : index
    %c0_8 = arith.constant 0 : index
    %17 = vector.load %arg4[%c0_7, %c0_8] : memref<64x64xbf16, #tpu.memory_space<vmem>>, vector<64x64xbf16>
    %18 = arith.truncf %16 : vector<8x64xf32> to vector<8x64xbf16>
    %cst_9 = arith.constant dense<0.000000e+00> : vector<8x64xf32>
    %19 = tpu.matmul %18, %17, %cst_9 {dimension_numbers = #tpu.dot_dimension_numbers<[1], [0], [0], [1], [0, 0, 1, 1], [], []>} : vector<8x64xbf16>, vector<64x64xbf16>, vector<8x64xf32> -> vector<8x64xf32>
    %c0_10 = arith.constant 0 : index
    %c0_11 = arith.constant 0 : index
    %20 = vector.load %arg5[%c0_10, %c0_11] : memref<1x64xf32, #tpu.memory_space<vmem>>, vector<1x64xf32>
    %21 = vector.broadcast %20 : vector<1x64xf32> to vector<8x64xf32>
    %22 = arith.addf %19, %21 : vector<8x64xf32>
    %cst_12 = arith.constant 0.000000e+00 : f32
    %23 = vector.broadcast %cst_12 : f32 to vector<8x64xf32>
    %24 = arith.maximumf %22, %23 : vector<8x64xf32>
    %25 = math.absf %22 : vector<8x64xf32>
    %cst_13 = arith.constant 0.000000e+00 : f32
    %26 = vector.broadcast %cst_13 : f32 to vector<8x64xf32>
    %27 = arith.subf %26, %25 : vector<8x64xf32>
    %28 = math.exp %27 : vector<8x64xf32>
    %29 = math.log1p %28 : vector<8x64xf32>
    %30 = arith.addf %24, %29 : vector<8x64xf32>
    %31 = math.tanh %30 : vector<8x64xf32>
    %32 = arith.mulf %22, %31 : vector<8x64xf32>
    %c0_14 = arith.constant 0 : index
    %c0_15 = arith.constant 0 : index
    %33 = vector.load %arg6[%c0_14, %c0_15] : memref<64x8xbf16, #tpu.memory_space<vmem>>, vector<64x8xbf16>
    %34 = arith.truncf %32 : vector<8x64xf32> to vector<8x64xbf16>
    %cst_16 = arith.constant dense<0.000000e+00> : vector<8x8xf32>
    %35 = tpu.matmul %34, %33, %cst_16 {dimension_numbers = #tpu.dot_dimension_numbers<[1], [0], [0], [1], [0, 0, 1, 1], [], []>} : vector<8x64xbf16>, vector<64x8xbf16>, vector<8x8xf32> -> vector<8x8xf32>
    %c0_17 = arith.constant 0 : index
    %c0_18 = arith.constant 0 : index
    %36 = vector.load %arg7[%c0_17, %c0_18] : memref<1x8xf32, #tpu.memory_space<vmem>>, vector<1x8xf32>
    %37 = vector.broadcast %36 : vector<1x8xf32> to vector<8x8xf32>
    %38 = arith.addf %35, %37 : vector<8x8xf32>
    %c0_19 = arith.constant 0 : index
    %c0_20 = arith.constant 0 : index
    %39 = vector.load %arg8[%c0_19, %c0_20] : memref<8x256xbf16, #tpu.memory_space<vmem>>, vector<8x256xbf16>
    %40 = arith.truncf %38 : vector<8x8xf32> to vector<8x8xbf16>
    %cst_21 = arith.constant dense<0.000000e+00> : vector<8x256xf32>
    %41 = tpu.matmul %40, %39, %cst_21 {dimension_numbers = #tpu.dot_dimension_numbers<[1], [0], [0], [1], [0, 0, 1, 1], [], []>} : vector<8x8xbf16>, vector<8x256xbf16>, vector<8x256xf32> -> vector<8x256xf32>
    %c0_22 = arith.constant 0 : index
    %c0_23 = arith.constant 0 : index
    %42 = vector.load %arg9[%c0_22, %c0_23] : memref<1x256xf32, #tpu.memory_space<vmem>>, vector<1x256xf32>
    %43 = vector.broadcast %42 : vector<1x256xf32> to vector<8x256xf32>
    %44 = arith.addf %41, %43 : vector<8x256xf32>
    %cst_24 = arith.constant 0.000000e+00 : f32
    %45 = vector.broadcast %cst_24 : f32 to vector<8x256xf32>
    %46 = arith.maximumf %44, %45 : vector<8x256xf32>
    %c0_25 = arith.constant 0 : index
    %c0_26 = arith.constant 0 : index
    %47 = vector.load %arg10[%c0_25, %c0_26] : memref<256x256xbf16, #tpu.memory_space<vmem>>, vector<256x256xbf16>
    %48 = arith.truncf %46 : vector<8x256xf32> to vector<8x256xbf16>
    %cst_27 = arith.constant dense<0.000000e+00> : vector<8x256xf32>
    %49 = tpu.matmul %48, %47, %cst_27 {dimension_numbers = #tpu.dot_dimension_numbers<[1], [0], [0], [1], [0, 0, 1, 1], [], []>} : vector<8x256xbf16>, vector<256x256xbf16>, vector<8x256xf32> -> vector<8x256xf32>
    %c0_28 = arith.constant 0 : index
    %c0_29 = arith.constant 0 : index
    %50 = vector.load %arg11[%c0_28, %c0_29] : memref<1x256xf32, #tpu.memory_space<vmem>>, vector<1x256xf32>
    %51 = vector.broadcast %50 : vector<1x256xf32> to vector<8x256xf32>
    %52 = arith.addf %49, %51 : vector<8x256xf32>
    %cst_30 = arith.constant 0.000000e+00 : f32
    %53 = vector.broadcast %cst_30 : f32 to vector<8x256xf32>
    %54 = arith.maximumf %52, %53 : vector<8x256xf32>
    %c0_31 = arith.constant 0 : index
    %c0_32 = arith.constant 0 : index
    %55 = vector.load %arg12[%c0_31, %c0_32] : memref<256x16xbf16, #tpu.memory_space<vmem>>, vector<256x16xbf16>
    %56 = arith.truncf %54 : vector<8x256xf32> to vector<8x256xbf16>
    %cst_33 = arith.constant dense<0.000000e+00> : vector<8x16xf32>
    %57 = tpu.matmul %56, %55, %cst_33 {dimension_numbers = #tpu.dot_dimension_numbers<[1], [0], [0], [1], [0, 0, 1, 1], [], []>} : vector<8x256xbf16>, vector<256x16xbf16>, vector<8x16xf32> -> vector<8x16xf32>
    %c0_34 = arith.constant 0 : index
    %c0_35 = arith.constant 0 : index
    %58 = vector.load %arg13[%c0_34, %c0_35] : memref<1x16xf32, #tpu.memory_space<vmem>>, vector<1x16xf32>
    %59 = vector.broadcast %58 : vector<1x16xf32> to vector<8x16xf32>
    %60 = arith.addf %57, %59 : vector<8x16xf32>
    %61 = vector.extract_strided_slice %60 {offsets = [0, 0], sizes = [8, 8], strides = [1, 1]} : vector<8x16xf32> to vector<8x8xf32>
    %62 = vector.extract_strided_slice %60 {offsets = [0, 8], sizes = [8, 8], strides = [1, 1]} : vector<8x16xf32> to vector<8x8xf32>
    %63 = arith.negf %61 : vector<8x8xf32>
    %64 = math.exp %63 : vector<8x8xf32>
    %cst_36 = arith.constant 1.000000e+00 : f32
    %65 = vector.broadcast %cst_36 : f32 to vector<8x8xf32>
    %66 = arith.addf %65, %64 : vector<8x8xf32>
    %67 = arith.divf %65, %66 : vector<8x8xf32>
    %68 = math.roundeven %67 : vector<8x8xf32>
    %cst_37 = arith.constant dense<0xFF800000> : vector<8xf32>
    %69 = vector.multi_reduction <maximumf>, %62, %cst_37 [1] : vector<8x8xf32> to vector<8xf32>
    %70 = vector.shape_cast %69 : vector<8xf32> to vector<8x1xf32>
    %71 = vector.broadcast %70 : vector<8x1xf32> to vector<8x8xf32>
    %72 = arith.subf %62, %71 : vector<8x8xf32>
    %73 = math.exp %72 : vector<8x8xf32>
    %cst_38 = arith.constant dense<0.000000e+00> : vector<8xf32>
    %74 = vector.multi_reduction <add>, %73, %cst_38 [1] : vector<8x8xf32> to vector<8xf32>
    %75 = vector.shape_cast %74 : vector<8xf32> to vector<8x1xf32>
    %76 = tpu.reciprocal %75 {approx = true} : vector<8x1xf32> -> vector<8x1xf32>
    %77 = vector.broadcast %76 : vector<8x1xf32> to vector<8x8xf32>
    %78 = arith.mulf %73, %77 : vector<8x8xf32>
    %79 = arith.mulf %68, %78 : vector<8x8xf32>
    %cst_39 = arith.constant dense<0.000000e+00> : vector<8xf32>
    %80 = vector.multi_reduction <add>, %79, %cst_39 [1] : vector<8x8xf32> to vector<8xf32>
    %81 = vector.shape_cast %80 : vector<8xf32> to vector<8x1xf32>
    %cst_40 = arith.constant 9.99999993E-9 : f32
    %82 = vector.broadcast %cst_40 : f32 to vector<8x1xf32>
    %83 = arith.addf %81, %82 : vector<8x1xf32>
    %84 = tpu.reciprocal %83 {approx = true} : vector<8x1xf32> -> vector<8x1xf32>
    %85 = vector.broadcast %84 : vector<8x1xf32> to vector<8x8xf32>
    %86 = arith.mulf %79, %85 : vector<8x8xf32>
    %87 = tpu.concatenate %67, %78, %86 in 1 : vector<8x8xf32>, vector<8x8xf32>, vector<8x8xf32> -> vector<8x24xf32>
    %c0_41 = arith.constant 0 : index
    %c0_42 = arith.constant 0 : index
    %88 = vector.load %arg14[%c0_41, %c0_42] : memref<8x24xf32, #tpu.memory_space<vmem>>, vector<8x24xf32>
    tpu.vector_store %arg14[%c0_41, %c0_42], %87 {strides = array<i32>} : memref<8x24xf32, #tpu.memory_space<vmem>>, vector<8x24xf32>,
    return
  }
  func.func @transform_0(%arg0: i32) -> (i32, i32) {
    %c0_i32 = arith.constant 0 : i32
    %c0_i32_0 = arith.constant 0 : i32
    return %arg0, %c0_i32 : i32, i32
  }
  func.func @transform_1(%arg0: i32) -> (i32, i32) {
    %c0_i32 = arith.constant 0 : i32
    %c0_i32_0 = arith.constant 0 : i32
    %c0_i32_1 = arith.constant 0 : i32
    return %c0_i32, %c0_i32_0 : i32, i32
  }
  func.func @transform_2(%arg0: i32) -> (i32, i32) {
    %c0_i32 = arith.constant 0 : i32
    %c0_i32_0 = arith.constant 0 : i32
    %c0_i32_1 = arith.constant 0 : i32
    return %c0_i32, %c0_i32_0 : i32, i32
  }
  func.func @transform_3(%arg0: i32) -> (i32, i32) {
    %c0_i32 = arith.constant 0 : i32
    %c0_i32_0 = arith.constant 0 : i32
    %c0_i32_1 = arith.constant 0 : i32
    return %c0_i32, %c0_i32_0 : i32, i32
  }
  func.func @transform_4(%arg0: i32) -> (i32, i32) {
    %c0_i32 = arith.constant 0 : i32
    %c0_i32_0 = arith.constant 0 : i32
    %c0_i32_1 = arith.constant 0 : i32
    return %c0_i32, %c0_i32_0 : i32, i32
  }
  func.func @transform_5(%arg0: i32) -> (i32, i32) {
    %c0_i32 = arith.constant 0 : i32
    %c0_i32_0 = arith.constant 0 : i32
    %c0_i32_1 = arith.constant 0 : i32
    return %c0_i32, %c0_i32_0 : i32, i32
  }
  func.func @transform_6(%arg0: i32) -> (i32, i32) {
    %c0_i32 = arith.constant 0 : i32
    %c0_i32_0 = arith.constant 0 : i32
    %c0_i32_1 = arith.constant 0 : i32
    return %c0_i32, %c0_i32_0 : i32, i32
  }
  func.func @transform_7(%arg0: i32) -> (i32, i32) {
    %c0_i32 = arith.constant 0 : i32
    %c0_i32_0 = arith.constant 0 : i32
    %c0_i32_1 = arith.constant 0 : i32
    return %c0_i32, %c0_i32_0 : i32, i32
  }
  func.func @transform_8(%arg0: i32) -> (i32, i32) {
    %c0_i32 = arith.constant 0 : i32
    %c0_i32_0 = arith.constant 0 : i32
    %c0_i32_1 = arith.constant 0 : i32
    return %c0_i32, %c0_i32_0 : i32, i32
  }
  func.func @transform_9(%arg0: i32) -> (i32, i32) {
    %c0_i32 = arith.constant 0 : i32
    %c0_i32_0 = arith.constant 0 : i32
    %c0_i32_1 = arith.constant 0 : i32
    return %c0_i32, %c0_i32_0 : i32, i32
  }
  func.func @transform_10(%arg0: i32) -> (i32, i32) {
    %c0_i32 = arith.constant 0 : i32
    %c0_i32_0 = arith.constant 0 : i32
    %c0_i32_1 = arith.constant 0 : i32
    return %c0_i32, %c0_i32_0 : i32, i32
  }
  func.func @transform_11(%arg0: i32) -> (i32, i32) {
    %c0_i32 = arith.constant 0 : i32
    %c0_i32_0 = arith.constant 0 : i32
    %c0_i32_1 = arith.constant 0 : i32
    return %c0_i32, %c0_i32_0 : i32, i32
  }
  func.func @transform_12(%arg0: i32) -> (i32, i32) {
    %c0_i32 = arith.constant 0 : i32
    %c0_i32_0 = arith.constant 0 : i32
    %c0_i32_1 = arith.constant 0 : i32
    return %c0_i32, %c0_i32_0 : i32, i32
  }
  func.func @transform_13(%arg0: i32) -> (i32, i32) {
    %c0_i32 = arith.constant 0 : i32
    %c0_i32_0 = arith.constant 0 : i32
    return %arg0, %c0_i32 : i32, i32
  }
}

</mosaic_0001>

<llo_original>
// kernel: dbranch_actor.1
$region0: #{dbranch_actor.1}
  #allocation0 [shape = 'u32[]', space=smem, size = 0x4, offset = 0x4, fixed_abs, tag = 'smem constant byte address 0x4 - core index']
  #allocation1 [shape = 'u32[144,128]{1,0:T(1,128)}', space=vmem, size = 0x12000, scoped, tag = 'internal scratch']
  %s0 = inlined_call_operand.vmem [shape: f32[8,16], index: 0, kind: input, shape index: {}]
  %s1 = inlined_call_operand.vmem [shape: bf16[16,64], index: 1, kind: input, shape index: {}]
  %s2 = inlined_call_operand.vmem [shape: f32[1,64], index: 2, kind: input, shape index: {}]
  %s3 = inlined_call_operand.vmem [shape: bf16[64,64], index: 3, kind: input, shape index: {}]
  %s4 = inlined_call_operand.vmem [shape: f32[1,64], index: 4, kind: input, shape index: {}]
  %s5 = inlined_call_operand.vmem [shape: bf16[64,8], index: 5, kind: input, shape index: {}]
  %s6 = inlined_call_operand.vmem [shape: f32[1,8], index: 6, kind: input, shape index: {}]
  %s7 = inlined_call_operand.vmem [shape: bf16[8,256], index: 7, kind: input, shape index: {}]
  %s8 = inlined_call_operand.vmem [shape: f32[1,256], index: 8, kind: input, shape index: {}]
  %s9 = inlined_call_operand.vmem [shape: bf16[256,256], index: 9, kind: input, shape index: {}]
  %s10 = inlined_call_operand.vmem [shape: f32[1,256], index: 10, kind: input, shape index: {}]
  %s11 = inlined_call_operand.vmem [shape: bf16[256,16], index: 11, kind: input, shape index: {}]
  %s12 = inlined_call_operand.vmem [shape: f32[1,16], index: 12, kind: input, shape index: {}]
  %s13 = inlined_call_operand.vmem [shape: f32[8,24], index: 13, kind: output, shape index: {}]
  %s14 = sld [smem:[#allocation0]]
  $region62: #{dbranch_actor.1} parent=0
    _
  %s16 = ssub.s32 1, %s14
  %s17 = scalar_select 0, %s16, %s14
  // Predicated region
  $region2: #{dbranch_actor.1} parent=0 // pred_check
    _
  $region3: #{dbranch_actor.1} parent=0 // pred_check_branch
    %19 = sbr.rel (0) target = $region5
  $region4: #{dbranch_actor.1} parent=0 // pred_region
    _
  $region5: #{dbranch_actor.1} parent=0 // pred_fallthru
    _
  // Predicated region
  $region6: #{dbranch_actor.1} parent=0 // pred_check
    _
  $region7: #{dbranch_actor.1} parent=0 // pred_check_branch
    %21 = sbr.rel (0) target = $region9
  $region8: #{dbranch_actor.1} parent=0 // pred_region
    _
  $region9: #{dbranch_actor.1} parent=0 // pred_fallthru
    _
  // Predicated region
  $region10: #{dbranch_actor.1} parent=0 // pred_check
    _
  $region11: #{dbranch_actor.1} parent=0 // pred_check_branch
    %23 = sbr.rel (0) target = $region13
  $region12: #{dbranch_actor.1} parent=0 // pred_region
    _
  $region13: #{dbranch_actor.1} parent=0 // pred_fallthru
    _
  // Predicated region
  $region14: #{dbranch_actor.1} parent=0 // pred_check
    _
  $region15: #{dbranch_actor.1} parent=0 // pred_check_branch
    %25 = sbr.rel (0) target = $region17
  $region16: #{dbranch_actor.1} parent=0 // pred_region
    _
  $region17: #{dbranch_actor.1} parent=0 // pred_fallthru
    _
  // Predicated region
  $region18: #{dbranch_actor.1} parent=0 // pred_check
    _
  $region19: #{dbranch_actor.1} parent=0 // pred_check_branch
    %27 = sbr.rel (0) target = $region21
  $region20: #{dbranch_actor.1} parent=0 // pred_region
    _
  $region21: #{dbranch_actor.1} parent=0 // pred_fallthru
    _
  // Predicated region
  $region22: #{dbranch_actor.1} parent=0 // pred_check
    _
  $region23: #{dbranch_actor.1} parent=0 // pred_check_branch
    %29 = sbr.rel (0) target = $region25
  $region24: #{dbranch_actor.1} parent=0 // pred_region
    _
  $region25: #{dbranch_actor.1} parent=0 // pred_fallthru
    _
  // Predicated region
  $region26: #{dbranch_actor.1} parent=0 // pred_check
    _
  $region27: #{dbranch_actor.1} parent=0 // pred_check_branch
    %31 = sbr.rel (0) target = $region29
  $region28: #{dbranch_actor.1} parent=0 // pred_region
    _
  $region29: #{dbranch_actor.1} parent=0 // pred_fallthru
    _
  // Predicated region
  $region30: #{dbranch_actor.1} parent=0 // pred_check
    _
  $region31: #{dbranch_actor.1} parent=0 // pred_check_branch
    %33 = sbr.rel (0) target = $region33
  $region32: #{dbranch_actor.1} parent=0 // pred_region
    _
  $region33: #{dbranch_actor.1} parent=0 // pred_fallthru
    _
  // Predicated region
  $region34: #{dbranch_actor.1} parent=0 // pred_check
    _
  $region35: #{dbranch_actor.1} parent=0 // pred_check_branch
    %35 = sbr.rel (0) target = $region37
  $region36: #{dbranch_actor.1} parent=0 // pred_region
    _
  $region37: #{dbranch_actor.1} parent=0 // pred_fallthru
    _
  // Predicated region
  $region38: #{dbranch_actor.1} parent=0 // pred_check
    _
  $region39: #{dbranch_actor.1} parent=0 // pred_check_branch
    %37 = sbr.rel (0) target = $region41
  $region40: #{dbranch_actor.1} parent=0 // pred_region
    _
  $region41: #{dbranch_actor.1} parent=0 // pred_fallthru
    _
  // Predicated region
  $region42: #{dbranch_actor.1} parent=0 // pred_check
    _
  $region43: #{dbranch_actor.1} parent=0 // pred_check_branch
    %39 = sbr.rel (0) target = $region45
  $region44: #{dbranch_actor.1} parent=0 // pred_region
    _
  $region45: #{dbranch_actor.1} parent=0 // pred_fallthru
    _
  // Predicated region
  $region46: #{dbranch_actor.1} parent=0 // pred_check
    _
  $region47: #{dbranch_actor.1} parent=0 // pred_check_branch
    %41 = sbr.rel (0) target = $region49
  $region48: #{dbranch_actor.1} parent=0 // pred_region
    _
  $region49: #{dbranch_actor.1} parent=0 // pred_fallthru
    _
  // Predicated region
  $region50: #{dbranch_actor.1} parent=0 // pred_check
    _
  $region51: #{dbranch_actor.1} parent=0 // pred_check_branch
    %43 = sbr.rel (0) target = $region53
  $region52: #{dbranch_actor.1} parent=0 // pred_region
    _
  $region53: #{dbranch_actor.1} parent=0 // pred_fallthru
    _
  %v45 = vld [vmem:[%s0] sm:$0xff]
  %v46 = vld [vmem:[%s1] sm:$0xf]
  %v47 = vld [vmem:[%s1 + $0x4] sm:$0xf]
  %v48 = vpack.c.bf16 %v45, %v45
  %v49 = vld [vmem:[%s2] sm:$0x1]
  %v51 = vlaneseq
  %v52 = vshrl.u32 %v51, 7
  %v53 = vsub.s32 0, %v52
  %v54 = vrot.slane %v49, %v53
  %v58 = vunpack.c.l.b16 %v46
  %v59 = vunpack.c.l.b16 %v47
  %v60 = vpack.c.b16 %v59, %v58
  %vm62 = vcmask 130048
  %v64 = vsel %vm62, %v48, 0
  %66 = vmatprep.subr.bf16.mxu0 0
  %67 = vmatpush1.bf16.msra.mxu0 0
  %68 = vmatprep.subr.bf16.mxu0 0
  %69 = vmatpush1.bf16.msra.mxu0 0
  %70 = vmatprep.subr.bf16.mxu0 0
  %71 = vmatpush1.bf16.msra.mxu0 0
  %72 = vmatprep.subr.bf16.mxu0 0
  %73 = vmatpush1.bf16.msra.mxu0 0
  %74 = vmatprep.subr.bf16.mxu0 0
  %75 = vmatpush1.bf16.msra.mxu0 0
  %76 = vmatprep.subr.bf16.mxu0 0
  %77 = vmatpush1.bf16.msra.mxu0 0
  %78 = vmatprep.subr.bf16.mxu0 0
  %79 = vmatpush1.bf16.msra.mxu0 0
  %80 = vmatprep.subr.bf16.mxu0 0
  %81 = vmatpush1.bf16.msra.mxu0 %v60
  %82 = vmatprep.subr.bf16.mxu0 0
  %83 = vmatpush2.bf16.msra.mxu0 0
  %84 = vmatprep.subr.bf16.mxu0 0
  %85 = vmatpush2.bf16.msra.mxu0 0
  %86 = vmatprep.subr.bf16.mxu0 0
  %87 = vmatpush2.bf16.msra.mxu0 0
  %88 = vmatprep.subr.bf16.mxu0 0
  %89 = vmatpush2.bf16.msra.mxu0 0
  %90 = vmatprep.subr.bf16.mxu0 0
  %91 = vmatpush2.bf16.msra.mxu0 0
  %92 = vmatprep.subr.bf16.mxu0 0
  %93 = vmatpush2.bf16.msra.mxu0 0
  %94 = vmatprep.subr.bf16.mxu0 0
  %95 = vmatpush2.bf16.msra.mxu0 0
  %96 = vmatprep.subr.bf16.mxu0 0
  %97 = vmatpush2.bf16.msra.mxu0 0
  %98 = vmatprep.mubr.bf16.mxu0 0
  %99 = vmatmul.mubr.bf16.gmra.mxu0 %v64
  %v100 = vpop.f32.mrf.mxu0
  %v101 = vadd.f32 %v54, %v100
  %v102 = vpop.f32.mrf.mxu0
  %v103 = vpop.f32.mrf.mxu0
  %v104 = vpop.f32.mrf.mxu0
  %105 = vdwg.mxu0
  %v106 = vmax.f32 %v101, 0.0
  %v107 = vand.u32 2147483647, %v101
  %v108 = vsub.f32 0.0, %v107
  %v109 = vmul.f32 %v108, 1.442695
  %v110 = vpow.pop %v109
  %v111 = vadd.f32 %v110, 1.0
  %v112 = vlog2.pop %v111
  %v113 = vmul.f32 %v112, 0.6931472
  %v114 = vmul.f32 -0.5, %v110
  %v115 = vadd.f32 %v114, 1.0
  %v116 = vmul.f32 %v115, %v110
  %v117 = vand.u32 2147483647, %v110
  %vm118 = vcmp.lt.f32.partialorder %v117, 0.0004427343
  %v119 = vsel %vm118, %v116, %v113
  %v120 = vadd.f32 %v106, %v119
  %v121 = vtanh.pop %v120
  %v122 = vmul.f32 %v101, %v121
  %v123 = vld [vmem:[%s3] sm:$0xf]
  %v124 = vld [vmem:[%s3 + $0x4] sm:$0xf]
  %v125 = vld [vmem:[%s3 + $0x8] sm:$0xf]
  %v126 = vld [vmem:[%s3 + $0xc] sm:$0xf]
  %v127 = vld [vmem:[%s3 + $0x10] sm:$0xf]
  %v128 = vld [vmem:[%s3 + $0x14] sm:$0xf]
  %v129 = vld [vmem:[%s3 + $0x18] sm:$0xf]
  %v130 = vld [vmem:[%s3 + $0x1c] sm:$0xf]
  %v131 = vpack.c.bf16 %v122, %v122
  %v132 = vld [vmem:[%s4] sm:$0x1]
  %v134 = vlaneseq
  %v135 = vshrl.u32 %v134, 7
  %v136 = vsub.s32 0, %v135
  %v137 = vrot.slane %v132, %v136
  %v147 = vunpack.c.l.b16 %v123
  %v148 = vunpack.c.l.b16 %v124
  %v149 = vunpack.c.l.b16 %v125
  %v150 = vunpack.c.l.b16 %v126
  %v151 = vunpack.c.l.b16 %v127
  %v152 = vunpack.c.l.b16 %v128
  %v153 = vunpack.c.l.b16 %v129
  %v154 = vunpack.c.l.b16 %v130
  %v155 = vpack.c.b16 %v148, %v147
  %v156 = vpack.c.b16 %v150, %v149
  %v157 = vpack.c.b16 %v152, %v151
  %v158 = vpack.c.b16 %v154, %v153
  %vm163 = vcmask 523264
  %v165 = vsel %vm163, %v131, 0
  %167 = vmatprep.subr.bf16.mxu0 0
  %168 = vmatpush1.bf16.msra.mxu0 0
  %169 = vmatprep.subr.bf16.mxu0 0
  %170 = vmatpush1.bf16.msra.mxu0 0
  %171 = vmatprep.subr.bf16.mxu0 0
  %172 = vmatpush1.bf16.msra.mxu0 0
  %173 = vmatprep.subr.bf16.mxu0 0
  %174 = vmatpush1.bf16.msra.mxu0 0
  %175 = vmatprep.subr.bf16.mxu0 0
  %176 = vmatpush1.bf16.msra.mxu0 %v158
  %177 = vmatprep.subr.bf16.mxu0 0
  %178 = vmatpush1.bf16.msra.mxu0 %v157
  %179 = vmatprep.subr.bf16.mxu0 0
  %180 = vmatpush1.bf16.msra.mxu0 %v156
  %181 = vmatprep.subr.bf16.mxu0 0
  %182 = vmatpush1.bf16.msra.mxu0 %v155
  %183 = vmatprep.subr.bf16.mxu0 0
  %184 = vmatpush2.bf16.msra.mxu0 0
  %185 = vmatprep.subr.bf16.mxu0 0
  %186 = vmatpush2.bf16.msra.mxu0 0
  %187 = vmatprep.subr.bf16.mxu0 0
  %188 = vmatpush2.bf16.msra.mxu0 0
  %189 = vmatprep.subr.bf16.mxu0 0
  %190 = vmatpush2.bf16.msra.mxu0 0
  %191 = vmatprep.subr.bf16.mxu0 0
  %192 = vmatpush2.bf16.msra.mxu0 0
  %193 = vmatprep.subr.bf16.mxu0 0
  %194 = vmatpush2.bf16.msra.mxu0 0
  %195 = vmatprep.subr.bf16.mxu0 0
  %196 = vmatpush2.bf16.msra.mxu0 0
  %197 = vmatprep.subr.bf16.mxu0 0
  %198 = vmatpush2.bf16.msra.mxu0 0
  %199 = vmatprep.mubr.bf16.mxu0 0
  %200 = vmatmul.mubr.bf16.gmra.mxu0 %v165
  %v201 = vpop.f32.mrf.mxu0
  %v202 = vadd.f32 %v137, %v201
  %v203 = vpop.f32.mrf.mxu0
  %v204 = vpop.f32.mrf.mxu0
  %v205 = vpop.f32.mrf.mxu0
  %206 = vdwg.mxu0
  %v207 = vmax.f32 %v202, 0.0
  %v208 = vand.u32 2147483647, %v202
  %v209 = vsub.f32 0.0, %v208
  %v210 = vmul.f32 %v209, 1.442695
  %v211 = vpow.pop %v210
  %v212 = vadd.f32 %v211, 1.0
  %v213 = vlog2.pop %v212
  %v214 = vmul.f32 %v213, 0.6931472
  %v215 = vmul.f32 -0.5, %v211
  %v216 = vadd.f32 %v215, 1.0
  %v217 = vmul.f32 %v216, %v211
  %v218 = vand.u32 2147483647, %v211
  %vm219 = vcmp.lt.f32.partialorder %v218, 0.0004427343
  %v220 = vsel %vm219, %v217, %v214
  %v221 = vadd.f32 %v207, %v220
  %v222 = vtanh.pop %v221
  %v223 = vmul.f32 %v202, %v222
  %v224 = vld [vmem:[%s5] sm:$0xf]
  %v225 = vld [vmem:[%s5 + $0x4] sm:$0xf]
  %v226 = vld [vmem:[%s5 + $0x8] sm:$0xf]
  %v227 = vld [vmem:[%s5 + $0xc] sm:$0xf]
  %v228 = vld [vmem:[%s5 + $0x10] sm:$0xf]
  %v229 = vld [vmem:[%s5 + $0x14] sm:$0xf]
  %v230 = vld [vmem:[%s5 + $0x18] sm:$0xf]
  %v231 = vld [vmem:[%s5 + $0x1c] sm:$0xf]
  %v232 = vpack.c.bf16 %v223, %v223
  %v233 = vld [vmem:[%s6] sm:$0x1]
  %v235 = vlaneseq
  %v236 = vshrl.u32 %v235, 7
  %v237 = vsub.s32 0, %v236
  %v238 = vrot.slane %v233, %v237
  %v248 = vunpack.c.l.b16 %v224
  %v249 = vunpack.c.l.b16 %v225
  %v250 = vunpack.c.l.b16 %v226
  %v251 = vunpack.c.l.b16 %v227
  %v252 = vunpack.c.l.b16 %v228
  %v253 = vunpack.c.l.b16 %v229
  %v254 = vunpack.c.l.b16 %v230
  %v255 = vunpack.c.l.b16 %v231
  %v256 = vpack.c.b16 %v249, %v248
  %v257 = vpack.c.b16 %v251, %v250
  %v258 = vpack.c.b16 %v253, %v252
  %v259 = vpack.c.b16 %v255, %v254
  %v265 = vsel %vm163, %v232, 0
  %267 = vmatprep.subr.bf16.mxu0 0
  %268 = vmatpush1.bf16.msra.mxu0 0
  %269 = vmatprep.subr.bf16.mxu0 0
  %270 = vmatpush1.bf16.msra.mxu0 0
  %271 = vmatprep.subr.bf16.mxu0 0
  %272 = vmatpush1.bf16.msra.mxu0 0
  %273 = vmatprep.subr.bf16.mxu0 0
  %274 = vmatpush1.bf16.msra.mxu0 0
  %275 = vmatprep.subr.bf16.mxu0 0
  %276 = vmatpush1.bf16.msra.mxu0 %v259
  %277 = vmatprep.subr.bf16.mxu0 0
  %278 = vmatpush1.bf16.msra.mxu0 %v258
  %279 = vmatprep.subr.bf16.mxu0 0
  %280 = vmatpush1.bf16.msra.mxu0 %v257
  %281 = vmatprep.subr.bf16.mxu0 0
  %282 = vmatpush1.bf16.msra.mxu0 %v256
  %283 = vmatprep.subr.bf16.mxu0 0
  %284 = vmatpush2.bf16.msra.mxu0 0
  %285 = vmatprep.subr.bf16.mxu0 0
  %286 = vmatpush2.bf16.msra.mxu0 0
  %287 = vmatprep.subr.bf16.mxu0 0
  %288 = vmatpush2.bf16.msra.mxu0 0
  %289 = vmatprep.subr.bf16.mxu0 0
  %290 = vmatpush2.bf16.msra.mxu0 0
  %291 = vmatprep.subr.bf16.mxu0 0
  %292 = vmatpush2.bf16.msra.mxu0 0
  %293 = vmatprep.subr.bf16.mxu0 0
  %294 = vmatpush2.bf16.msra.mxu0 0
  %295 = vmatprep.subr.bf16.mxu0 0
  %296 = vmatpush2.bf16.msra.mxu0 0
  %297 = vmatprep.subr.bf16.mxu0 0
  %298 = vmatpush2.bf16.msra.mxu0 0
  %299 = vmatprep.mubr.bf16.mxu0 0
  %300 = vmatmul.mubr.bf16.gmra.mxu0 %v265
  %v301 = vpop.f32.mrf.mxu0
  %v302 = vadd.f32 %v238, %v301
  %v303 = vpop.f32.mrf.mxu0
  %v304 = vpop.f32.mrf.mxu0
  %v305 = vpop.f32.mrf.mxu0
  %306 = vdwg.mxu0
  %v307 = vld [vmem:[%s7] sm:$0xff]
  %v308 = vpack.c.bf16 %v302, %v302
  %v309 = vld [vmem:[%s8] sm:$0x3]
  %v311 = vlaneseq
  %v312 = vshrl.u32 %v311, 7
  %v313 = vsub.s32 0, %v312
  %v314 = vrot.slane %v309, %v313
  %v315 = vlaneseq
  %v316 = vshrl.u32 %v315, 7
  %v317 = vsub.s32 1, %v316
  %v318 = vrot.slane %v309, %v317
  %v322 = vunpack.c.l.b16 %v307
  %v323 = vunpack.c.h.b16 %v307
  %v324 = vpack.c.b16 %v322, %v322
  %v325 = vpack.c.b16 %v323, %v323
  %vm326 = vcmask 64512
  %v328 = vsel %vm326, %v308, 0
  %vm330 = vcmask 1043456
  %v332 = vsel %vm330, %v324, 0
  %v335 = vsel %vm330, %v325, 0
  %337 = vmatprep.subr.bf16.mxu0 0
  %338 = vmatpush1.bf16.msra.mxu0 0
  %339 = vmatprep.subr.bf16.mxu0 0
  %340 = vmatpush1.bf16.msra.mxu0 0
  %341 = vmatprep.subr.bf16.mxu0 0
  %342 = vmatpush1.bf16.msra.mxu0 0
  %343 = vmatprep.subr.bf16.mxu0 0
  %344 = vmatpush1.bf16.msra.mxu0 0
  %345 = vmatprep.subr.bf16.mxu0 0
  %346 = vmatpush1.bf16.msra.mxu0 0
  %347 = vmatprep.subr.bf16.mxu0 0
  %348 = vmatpush1.bf16.msra.mxu0 0
  %349 = vmatprep.subr.bf16.mxu0 0
  %350 = vmatpush1.bf16.msra.mxu0 0
  %351 = vmatprep.subr.bf16.mxu0 %v335
  %352 = vmatpush1.bf16.msra.mxu0 %v332
  %353 = vmatprep.subr.bf16.mxu0 0
  %354 = vmatpush2.bf16.msra.mxu0 0
  %355 = vmatprep.subr.bf16.mxu0 0
  %356 = vmatpush2.bf16.msra.mxu0 0
  %357 = vmatprep.subr.bf16.mxu0 0
  %358 = vmatpush2.bf16.msra.mxu0 0
  %359 = vmatprep.subr.bf16.mxu0 0
  %360 = vmatpush2.bf16.msra.mxu0 0
  %361 = vmatprep.subr.bf16.mxu0 0
  %362 = vmatpush2.bf16.msra.mxu0 0
  %363 = vmatprep.subr.bf16.mxu0 0
  %364 = vmatpush2.bf16.msra.mxu0 0
  %365 = vmatprep.subr.bf16.mxu0 0
  %366 = vmatpush2.bf16.msra.mxu0 0
  %367 = vmatprep.subr.bf16.mxu0 0
  %368 = vmatpush2.bf16.msra.mxu0 0
  %369 = vmatprep.mubr.bf16.mxu0 0
  %370 = vmatmul.mubr.bf16.gmra.mxu0 %v328
  %v371 = vpop.f32.mrf.mxu0
  %v372 = vadd.f32 %v314, %v371
  %v373 = vpop.f32.mrf.mxu0
  %v374 = vadd.f32 %v318, %v373
  %v375 = vpop.f32.mrf.mxu0
  %v376 = vpop.f32.mrf.mxu0
  %377 = vdwg.mxu0
  %v378 = vmax.f32 %v372, 0.0
  %v379 = vmax.f32 %v374, 0.0
  %v380 = vld [vmem:[%s9] sm:$0xff]
  %v381 = vld [vmem:[%s9 + $0x8] sm:$0xff]
  %v382 = vld [vmem:[%s9 + $0x10] sm:$0xff]
  %v383 = vld [vmem:[%s9 + $0x18] sm:$0xff]
  %v384 = vld [vmem:[%s9 + $0x20] sm:$0xff]
  %v385 = vld [vmem:[%s9 + $0x28] sm:$0xff]
  %v386 = vld [vmem:[%s9 + $0x30] sm:$0xff]
  %v387 = vld [vmem:[%s9 + $0x38] sm:$0xff]
  %v388 = vld [vmem:[%s9 + $0x40] sm:$0xff]
  %v389 = vld [vmem:[%s9 + $0x48] sm:$0xff]
  %v390 = vld [vmem:[%s9 + $0x50] sm:$0xff]
  %v391 = vld [vmem:[%s9 + $0x58] sm:$0xff]
  %v392 = vld [vmem:[%s9 + $0x60] sm:$0xff]
  %v393 = vld [vmem:[%s9 + $0x68] sm:$0xff]
  %v394 = vld [vmem:[%s9 + $0x70] sm:$0xff]
  %v395 = vld [vmem:[%s9 + $0x78] sm:$0xff]
  %v396 = vld [vmem:[%s9 + $0x80] sm:$0xff]
  %v397 = vld [vmem:[%s9 + $0x88] sm:$0xff]
  %v398 = vld [vmem:[%s9 + $0x90] sm:$0xff]
  %v399 = vld [vmem:[%s9 + $0x98] sm:$0xff]
  %v400 = vld [vmem:[%s9 + $0xa0] sm:$0xff]
  %v401 = vld [vmem:[%s9 + $0xa8] sm:$0xff]
  %v402 = vld [vmem:[%s9 + $0xb0] sm:$0xff]
  %v403 = vld [vmem:[%s9 + $0xb8] sm:$0xff]
  %v404 = vld [vmem:[%s9 + $0xc0] sm:$0xff]
  %v405 = vld [vmem:[%s9 + $0xc8] sm:$0xff]
  %v406 = vld [vmem:[%s9 + $0xd0] sm:$0xff]
  %v407 = vld [vmem:[%s9 + $0xd8] sm:$0xff]
  %v408 = vld [vmem:[%s9 + $0xe0] sm:$0xff]
  %v409 = vld [vmem:[%s9 + $0xe8] sm:$0xff]
  %v410 = vld [vmem:[%s9 + $0xf0] sm:$0xff]
  %v411 = vld [vmem:[%s9 + $0xf8] sm:$0xff]
  %v412 = vpack.c.bf16 %v378, %v378
  %v413 = vpack.c.bf16 %v379, %v379
  %v414 = vld [vmem:[%s10] sm:$0x3]
  %v416 = vlaneseq
  %v417 = vshrl.u32 %v416, 7
  %v418 = vsub.s32 0, %v417
  %v419 = vrot.slane %v414, %v418
  %v420 = vlaneseq
  %v421 = vshrl.u32 %v420, 7
  %v422 = vsub.s32 1, %v421
  %v423 = vrot.slane %v414, %v422
  %v458 = vunpack.c.l.b16 %v380
  %v459 = vunpack.c.h.b16 %v380
  %v460 = vunpack.c.l.b16 %v381
  %v461 = vunpack.c.h.b16 %v381
  %v462 = vunpack.c.l.b16 %v382
  %v463 = vunpack.c.h.b16 %v382
  %v464 = vunpack.c.l.b16 %v383
  %v465 = vunpack.c.h.b16 %v383
  %v466 = vunpack.c.l.b16 %v384
  %v467 = vunpack.c.h.b16 %v384
  %v468 = vunpack.c.l.b16 %v385
  %v469 = vunpack.c.h.b16 %v385
  %v470 = vunpack.c.l.b16 %v386
  %v471 = vunpack.c.h.b16 %v386
  %v472 = vunpack.c.l.b16 %v387
  %v473 = vunpack.c.h.b16 %v387
  %v474 = vunpack.c.l.b16 %v388
  %v475 = vunpack.c.h.b16 %v388
  %v476 = vunpack.c.l.b16 %v389
  %v477 = vunpack.c.h.b16 %v389
  %v478 = vunpack.c.l.b16 %v390
  %v479 = vunpack.c.h.b16 %v390
  %v480 = vunpack.c.l.b16 %v391
  %v481 = vunpack.c.h.b16 %v391
  %v482 = vunpack.c.l.b16 %v392
  %v483 = vunpack.c.h.b16 %v392
  %v484 = vunpack.c.l.b16 %v393
  %v485 = vunpack.c.h.b16 %v393
  %v486 = vunpack.c.l.b16 %v394
  %v487 = vunpack.c.h.b16 %v394
  %v488 = vunpack.c.l.b16 %v395
  %v489 = vunpack.c.h.b16 %v395
  %v490 = vunpack.c.l.b16 %v396
  %v491 = vunpack.c.h.b16 %v396
  %v492 = vunpack.c.l.b16 %v397
  %v493 = vunpack.c.h.b16 %v397
  %v494 = vunpack.c.l.b16 %v398
  %v495 = vunpack.c.h.b16 %v398
  %v496 = vunpack.c.l.b16 %v399
  %v497 = vunpack.c.h.b16 %v399
  %v498 = vunpack.c.l.b16 %v400
  %v499 = vunpack.c.h.b16 %v400
  %v500 = vunpack.c.l.b16 %v401
  %v501 = vunpack.c.h.b16 %v401
  %v502 = vunpack.c.l.b16 %v402
  %v503 = vunpack.c.h.b16 %v402
  %v504 = vunpack.c.l.b16 %v403
  %v505 = vunpack.c.h.b16 %v403
  %v506 = vunpack.c.l.b16 %v404
  %v507 = vunpack.c.h.b16 %v404
  %v508 = vunpack.c.l.b16 %v405
  %v509 = vunpack.c.h.b16 %v405
  %v510 = vunpack.c.l.b16 %v406
  %v511 = vunpack.c.h.b16 %v406
  %v512 = vunpack.c.l.b16 %v407
  %v513 = vunpack.c.h.b16 %v407
  %v514 = vunpack.c.l.b16 %v408
  %v515 = vunpack.c.h.b16 %v408
  %v516 = vunpack.c.l.b16 %v409
  %v517 = vunpack.c.h.b16 %v409
  %v518 = vunpack.c.l.b16 %v410
  %v519 = vunpack.c.h.b16 %v410
  %v520 = vunpack.c.l.b16 %v411
  %v521 = vunpack.c.h.b16 %v411
  %v522 = vpack.c.b16 %v460, %v458
  %v523 = vpack.c.b16 %v461, %v459
  %v524 = vpack.c.b16 %v464, %v462
  %v525 = vpack.c.b16 %v465, %v463
  %v526 = vpack.c.b16 %v468, %v466
  %v527 = vpack.c.b16 %v469, %v467
  %v528 = vpack.c.b16 %v472, %v470
  %v529 = vpack.c.b16 %v473, %v471
  %v530 = vpack.c.b16 %v476, %v474
  %v531 = vpack.c.b16 %v477, %v475
  %v532 = vpack.c.b16 %v480, %v478
  %v533 = vpack.c.b16 %v481, %v479
  %v534 = vpack.c.b16 %v484, %v482
  %v535 = vpack.c.b16 %v485, %v483
  %v536 = vpack.c.b16 %v488, %v486
  %v537 = vpack.c.b16 %v489, %v487
  %v538 = vpack.c.b16 %v492, %v490
  %v539 = vpack.c.b16 %v493, %v491
  %v540 = vpack.c.b16 %v496, %v494
  %v541 = vpack.c.b16 %v497, %v495
  %v542 = vpack.c.b16 %v500, %v498
  %v543 = vpack.c.b16 %v501, %v499
  %v544 = vpack.c.b16 %v504, %v502
  %v545 = vpack.c.b16 %v505, %v503
  %v546 = vpack.c.b16 %v508, %v506
  %v547 = vpack.c.b16 %v509, %v507
  %v548 = vpack.c.b16 %v512, %v510
  %v549 = vpack.c.b16 %v513, %v511
  %v550 = vpack.c.b16 %v516, %v514
  %v551 = vpack.c.b16 %v517, %v515
  %v552 = vpack.c.b16 %v520, %v518
  %v553 = vpack.c.b16 %v521, %v519
  %586 = vmatprep.subr.bf16.mxu0 %v537
  %587 = vmatpush1.bf16.msra.mxu0 %v536
  %588 = vmatprep.subr.bf16.mxu0 %v535
  %589 = vmatpush1.bf16.msra.mxu0 %v534
  %590 = vmatprep.subr.bf16.mxu0 %v533
  %591 = vmatpush1.bf16.msra.mxu0 %v532
  %592 = vmatprep.subr.bf16.mxu0 %v531
  %593 = vmatpush1.bf16.msra.mxu0 %v530
  %594 = vmatprep.subr.bf16.mxu0 %v529
  %595 = vmatpush1.bf16.msra.mxu0 %v528
  %596 = vmatprep.subr.bf16.mxu0 %v527
  %597 = vmatpush1.bf16.msra.mxu0 %v526
  %598 = vmatprep.subr.bf16.mxu0 %v525
  %599 = vmatpush1.bf16.msra.mxu0 %v524
  %600 = vmatprep.subr.bf16.mxu0 %v523
  %601 = vmatpush1.bf16.msra.mxu0 %v522
  %602 = vmatprep.subr.bf16.mxu0 %v553
  %603 = vmatpush2.bf16.msra.mxu0 %v552
  %604 = vmatprep.subr.bf16.mxu0 %v551
  %605 = vmatpush2.bf16.msra.mxu0 %v550
  %606 = vmatprep.subr.bf16.mxu0 %v549
  %607 = vmatpush2.bf16.msra.mxu0 %v548
  %608 = vmatprep.subr.bf16.mxu0 %v547
  %609 = vmatpush2.bf16.msra.mxu0 %v546
  %610 = vmatprep.subr.bf16.mxu0 %v545
  %611 = vmatpush2.bf16.msra.mxu0 %v544
  %612 = vmatprep.subr.bf16.mxu0 %v543
  %613 = vmatpush2.bf16.msra.mxu0 %v542
  %614 = vmatprep.subr.bf16.mxu0 %v541
  %615 = vmatpush2.bf16.msra.mxu0 %v540
  %616 = vmatprep.subr.bf16.mxu0 %v539
  %617 = vmatpush2.bf16.msra.mxu0 %v538
  %618 = vmatprep.mubr.bf16.mxu0 %v413
  %619 = vmatmul.mubr.bf16.gmra.mxu0 %v412
  %v620 = vpop.f32.mrf.mxu0
  %v621 = vadd.f32 %v419, %v620
  %v622 = vpop.f32.mrf.mxu0
  %v623 = vadd.f32 %v423, %v622
  %v624 = vpop.f32.mrf.mxu0
  %v625 = vpop.f32.mrf.mxu0
  %626 = vdwg.mxu0
  %v627 = vmax.f32 %v621, 0.0
  %v628 = vmax.f32 %v623, 0.0
  %v629 = vld [vmem:[%s11] sm:$0xf]
  %v630 = vld [vmem:[%s11 + $0x4] sm:$0xf]
  %v631 = vld [vmem:[%s11 + $0x8] sm:$0xf]
  %v632 = vld [vmem:[%s11 + $0xc] sm:$0xf]
  %v633 = vld [vmem:[%s11 + $0x10] sm:$0xf]
  %v634 = vld [vmem:[%s11 + $0x14] sm:$0xf]
  %v635 = vld [vmem:[%s11 + $0x18] sm:$0xf]
  %v636 = vld [vmem:[%s11 + $0x1c] sm:$0xf]
  %v637 = vld [vmem:[%s11 + $0x20] sm:$0xf]
  %v638 = vld [vmem:[%s11 + $0x24] sm:$0xf]
  %v639 = vld [vmem:[%s11 + $0x28] sm:$0xf]
  %v640 = vld [vmem:[%s11 + $0x2c] sm:$0xf]
  %v641 = vld [vmem:[%s11 + $0x30] sm:$0xf]
  %v642 = vld [vmem:[%s11 + $0x34] sm:$0xf]
  %v643 = vld [vmem:[%s11 + $0x38] sm:$0xf]
  %v644 = vld [vmem:[%s11 + $0x3c] sm:$0xf]
  %v645 = vld [vmem:[%s11 + $0x40] sm:$0xf]
  %v646 = vld [vmem:[%s11 + $0x44] sm:$0xf]
  %v647 = vld [vmem:[%s11 + $0x48] sm:$0xf]
  %v648 = vld [vmem:[%s11 + $0x4c] sm:$0xf]
  %v649 = vld [vmem:[%s11 + $0x50] sm:$0xf]
  %v650 = vld [vmem:[%s11 + $0x54] sm:$0xf]
  %v651 = vld [vmem:[%s11 + $0x58] sm:$0xf]
  %v652 = vld [vmem:[%s11 + $0x5c] sm:$0xf]
  %v653 = vld [vmem:[%s11 + $0x60] sm:$0xf]
  %v654 = vld [vmem:[%s11 + $0x64] sm:$0xf]
  %v655 = vld [vmem:[%s11 + $0x68] sm:$0xf]
  %v656 = vld [vmem:[%s11 + $0x6c] sm:$0xf]
  %v657 = vld [vmem:[%s11 + $0x70] sm:$0xf]
  %v658 = vld [vmem:[%s11 + $0x74] sm:$0xf]
  %v659 = vld [vmem:[%s11 + $0x78] sm:$0xf]
  %v660 = vld [vmem:[%s11 + $0x7c] sm:$0xf]
  %v661 = vpack.c.bf16 %v627, %v627
  %v662 = vpack.c.bf16 %v628, %v628
  %v663 = vld [vmem:[%s12] sm:$0x1]
  %v665 = vlaneseq
  %v666 = vshrl.u32 %v665, 7
  %v667 = vsub.s32 0, %v666
  %v668 = vrot.slane %v663, %v667
  %v702 = vunpack.c.l.b16 %v629
  %v703 = vunpack.c.l.b16 %v630
  %v704 = vunpack.c.l.b16 %v631
  %v705 = vunpack.c.l.b16 %v632
  %v706 = vunpack.c.l.b16 %v633
  %v707 = vunpack.c.l.b16 %v634
  %v708 = vunpack.c.l.b16 %v635
  %v709 = vunpack.c.l.b16 %v636
  %v710 = vunpack.c.l.b16 %v637
  %v711 = vunpack.c.l.b16 %v638
  %v712 = vunpack.c.l.b16 %v639
  %v713 = vunpack.c.l.b16 %v640
  %v714 = vunpack.c.l.b16 %v641
  %v715 = vunpack.c.l.b16 %v642
  %v716 = vunpack.c.l.b16 %v643
  %v717 = vunpack.c.l.b16 %v644
  %v718 = vunpack.c.l.b16 %v645
  %v719 = vunpack.c.l.b16 %v646
  %v720 = vunpack.c.l.b16 %v647
  %v721 = vunpack.c.l.b16 %v648
  %v722 = vunpack.c.l.b16 %v649
  %v723 = vunpack.c.l.b16 %v650
  %v724 = vunpack.c.l.b16 %v651
  %v725 = vunpack.c.l.b16 %v652
  %v726 = vunpack.c.l.b16 %v653
  %v727 = vunpack.c.l.b16 %v654
  %v728 = vunpack.c.l.b16 %v655
  %v729 = vunpack.c.l.b16 %v656
  %v730 = vunpack.c.l.b16 %v657
  %v731 = vunpack.c.l.b16 %v658
  %v732 = vunpack.c.l.b16 %v659
  %v733 = vunpack.c.l.b16 %v660
  %v734 = vpack.c.b16 %v703, %v702
  %v735 = vpack.c.b16 %v705, %v704
  %v736 = vpack.c.b16 %v707, %v706
  %v737 = vpack.c.b16 %v709, %v708
  %v738 = vpack.c.b16 %v711, %v710
  %v739 = vpack.c.b16 %v713, %v712
  %v740 = vpack.c.b16 %v715, %v714
  %v741 = vpack.c.b16 %v717, %v716
  %v742 = vpack.c.b16 %v719, %v718
  %v743 = vpack.c.b16 %v721, %v720
  %v744 = vpack.c.b16 %v723, %v722
  %v745 = vpack.c.b16 %v725, %v724
  %v746 = vpack.c.b16 %v727, %v726
  %v747 = vpack.c.b16 %v729, %v728
  %v748 = vpack.c.b16 %v731, %v730
  %v749 = vpack.c.b16 %v733, %v732
  %766 = vmatprep.subr.bf16.mxu0 0
  %767 = vmatpush1.bf16.msra.mxu0 %v741
  %768 = vmatprep.subr.bf16.mxu0 0
  %769 = vmatpush1.bf16.msra.mxu0 %v740
  %770 = vmatprep.subr.bf16.mxu0 0
  %771 = vmatpush1.bf16.msra.mxu0 %v739
  %772 = vmatprep.subr.bf16.mxu0 0
  %773 = vmatpush1.bf16.msra.mxu0 %v738
  %774 = vmatprep.subr.bf16.mxu0 0
  %775 = vmatpush1.bf16.msra.mxu0 %v737
  %776 = vmatprep.subr.bf16.mxu0 0
  %777 = vmatpush1.bf16.msra.mxu0 %v736
  %778 = vmatprep.subr.bf16.mxu0 0
  %779 = vmatpush1.bf16.msra.mxu0 %v735
  %780 = vmatprep.subr.bf16.mxu0 0
  %781 = vmatpush1.bf16.msra.mxu0 %v734
  %782 = vmatprep.subr.bf16.mxu0 0
  %783 = vmatpush2.bf16.msra.mxu0 %v749
  %784 = vmatprep.subr.bf16.mxu0 0
  %785 = vmatpush2.bf16.msra.mxu0 %v748
  %786 = vmatprep.subr.bf16.mxu0 0
  %787 = vmatpush2.bf16.msra.mxu0 %v747
  %788 = vmatprep.subr.bf16.mxu0 0
  %789 = vmatpush2.bf16.msra.mxu0 %v746
  %790 = vmatprep.subr.bf16.mxu0 0
  %791 = vmatpush2.bf16.msra.mxu0 %v745
  %792 = vmatprep.subr.bf16.mxu0 0
  %793 = vmatpush2.bf16.msra.mxu0 %v744
  %794 = vmatprep.subr.bf16.mxu0 0
  %795 = vmatpush2.bf16.msra.mxu0 %v743
  %796 = vmatprep.subr.bf16.mxu0 0
  %797 = vmatpush2.bf16.msra.mxu0 %v742
  %798 = vmatprep.mubr.bf16.mxu0 %v662
  %799 = vmatmul.mubr.bf16.gmra.mxu0 %v661
  %v800 = vpop.f32.mrf.mxu0
  %v801 = vadd.f32 %v668, %v800
  %v802 = vpop.f32.mrf.mxu0
  %v803 = vpop.f32.mrf.mxu0
  %v804 = vpop.f32.mrf.mxu0
  %805 = vdwg.mxu0
  %v806 = vxor.u32 %v801, 2147483648
  %v807 = vmul.f32 %v806, 1.442695
  %v808 = vpow.pop %v807
  %v809 = vadd.f32 %v808, 1.0
  %v810 = vrcp.pop %v809
  %v811 = vmul.f32 1.0, %v810
  %v812 = vround.ne.pseudo %v811
  %vm813 = vcmask 130112
  %v814 = vsel %vm813, %v801, -inf
  %815 = vmax.xlane.f32.xlu0 %v814
  %v816 = vpop.xlane.xlu0 %815
  %v817 = vsub.f32 %v801, %v816
  %v818 = vmul.f32 %v817, 1.442695
  %v819 = vpow.pop %v818
  %821 = vrot.lane.b32.xlu0 %v819, 120
  %v822 = vpop.permute.xlu0 %821
  %v824 = vsel %vm326, %v822, 0.0
  %825 = vadd.xlane.f32.xlu0 %v824
  %v826 = vpop.xlane.xlu0 %825
  %v827 = vrcp.pop %v826
  %v828 = vmul.f32 %v819, %v827
  %830 = vrot.lane.b32.xlu0 %v828, 120
  %v831 = vpop.permute.xlu0 %830
  %v833 = vmul.f32 %v812, %v831
  %v834 = vsel %vm326, %v833, 0.0
  %835 = vadd.xlane.f32.xlu0 %v834
  %v836 = vpop.xlane.xlu0 %835
  %v837 = vadd.f32 %v836, 1e-08
  %v838 = vrcp.pop %v837
  %v839 = vmul.f32 %v833, %v838
  %841 = vrot.lane.b32.xlu0 %v839, 16
  %v842 = vpop.permute.xlu0 %841
  %v844 = vsel %vm326, %v811, %v828
  %v845 = vsel %vm62, %v844, %v842
  %vm846 = vcmask 195584
  %847 = vst.msk [vmem:[%s13] sm:$0xff] %vm846, %v845
  // Predicated region
  $region54: #{dbranch_actor.1} parent=0 // pred_check
    _
  $region55: #{dbranch_actor.1} parent=0 // pred_check_branch
    %849 = sbr.rel (0) target = $region57
  $region56: #{dbranch_actor.1} parent=0 // pred_region
    _
  $region57: #{dbranch_actor.1} parent=0 // pred_fallthru
    _
  // Predicated region
  $region58: #{dbranch_actor.1} parent=0 // pred_check
    _
  $region59: #{dbranch_actor.1} parent=0 // pred_check_branch
    %851 = sbr.rel (0) target = $region61
  $region60: #{dbranch_actor.1} parent=0 // pred_region
    _
  $region61: #{dbranch_actor.1} parent=0 // pred_fallthru
    _

</llo_original>
